<compile_context>
chip_gen: v6e
topology: v6e:2x2x1
jax: 0.10.0
libtpu: 0.0.40
codegen_flags: <defaults>
</compile_context>

<pallas_src>
import jax
import jax.numpy as jnp
from jax.experimental import pallas as pl
from jax.experimental.pallas import tpu as pltpu

_EPS = 1e-5


def model_kernel(x_ref, p_ref, o_ref):
    # x_ref: (2, B) VMEM  -- feature-major, batch along the 128-wide lane axis
    # p_ref: (20,) SMEM   -- [W(2x4) row-major | bias(4) | gamma(4) | beta(4)]
    # o_ref: (8, B) VMEM  -- feature-major output, duplicated halves on sublanes
    B = x_ref.shape[1]
    inv_b = 1.0 / B

    x0 = x_ref[0:1, :]                                       # (1, B) lane vector
    x1 = x_ref[1:2, :]                                       # (1, B)

    z_rows = []
    for f in range(4):                                       # tiny, fully unrolled
        w0 = p_ref[f]                                        # SMEM scalars splat on VPU
        w1 = p_ref[4 + f]
        bf = p_ref[8 + f]
        g = p_ref[12 + f]
        bt = p_ref[16 + f]

        # Folded affine layer as VPU broadcast-FMA (keep off the MXU).
        h = x0 * w0 + x1 * w1 + bf                           # (1, B)

        # Single-pass batch moments over the lane (batch) axis.
        s = jnp.sum(h, axis=-1, keepdims=True)               # (1, 1)
        ss = jnp.sum(h * h, axis=-1, keepdims=True)          # (1, 1)
        mean = s * inv_b
        var = ss * inv_b - mean * mean                       # biased, torch train mode
        z = (h - mean) * jax.lax.rsqrt(var + _EPS) * g + bt  # (1, B)
        z_rows.append(z)

    # stack([h,h],dim=1)+Flatten duplicates the 4 features: rows 0:4 and 4:8 are
    # identical.  Emit the whole (8, B) slab in ONE full-lane store.
    o_ref[...] = jnp.concatenate(z_rows + z_rows, axis=0)


def pack_params(w1, b1, w2, b2, gamma, beta):
    # Fold the two Linear layers ONCE at init (exact: no nonlinearity between)
    # and flatten every parameter into a single 20-scalar SMEM slab.
    W = w1 @ w2                                              # (2, 4)
    b = b1 @ w2 + b2                                         # (1, 4)
    return jnp.concatenate(
        [W.reshape(-1), b.reshape(-1), gamma.reshape(-1), beta.reshape(-1)]
    ).astype(jnp.float32)                                    # (20,)


@jax.jit
def model_forward(x, params_flat):
    # x: (B, 2) batch-major (PyTorch layout).  Wrapper-side transpose to the
    # feature-major layout so the batch rides the lane axis inside the kernel.
    x_t = x.T.astype(jnp.float32)                            # (2, B)
    B = x_t.shape[1]

    out_t = pl.pallas_call(
        model_kernel,
        out_shape=jax.ShapeDtypeStruct((8, B), jnp.float32),
        in_specs=[
            pl.BlockSpec(x_t.shape, lambda: (0, 0)),             # whole (2, B) tile
            pl.BlockSpec(memory_space=pltpu.MemorySpace.SMEM),   # params -> SMEM
        ],
        out_specs=pl.BlockSpec((8, B), lambda: (0, 0)),
        compiler_params=pltpu.CompilerParams(vmem_limit_bytes=16 * 1024 * 1024),
    )(x_t, params_flat)

    return out_t.T                                           # back to (B, 8)


if __name__ == "__main__":
    key = jax.random.PRNGKey(0)
    k_x, k_w1, k_b1, k_w2, k_b2 = jax.random.split(key, 5)

    B = 2
    x = jax.random.normal(k_x, (B, 2), dtype=jnp.float32)

    # Deterministic parameter init (shapes from nn.Linear(2,3), nn.Linear(3,4)),
    # stored pre-transposed so the math is x @ W.
    w1 = jax.random.uniform(k_w1, (2, 3), minval=-0.5, maxval=0.5, dtype=jnp.float32)
    b1 = jax.random.uniform(k_b1, (1, 3), minval=-0.5, maxval=0.5, dtype=jnp.float32)
    w2 = jax.random.uniform(k_w2, (3, 4), minval=-0.5, maxval=0.5, dtype=jnp.float32)
    b2 = jax.random.uniform(k_b2, (1, 4), minval=-0.5, maxval=0.5, dtype=jnp.float32)
    gamma = jnp.ones((1, 4), dtype=jnp.float32)
    beta = jnp.zeros((1, 4), dtype=jnp.float32)

    # Param folding / packing hoisted out of the per-call path (done once).
    params = pack_params(w1, b1, w2, b2, gamma, beta)

    out = model_forward(x, params)
    jax.block_until_ready(out)

    # Pure-JAX reference of the original (un-folded) graph.
    h = x @ w1 + b1
    h = h @ w2 + b2
    y = jnp.concatenate([h, h], axis=-1)
    m = jnp.mean(y, axis=0, keepdims=True)
    v = jnp.mean((y - m) ** 2, axis=0, keepdims=True)
    ref = (y - m) * jax.lax.rsqrt(v + _EPS) * jnp.tile(gamma, (1, 2)) + jnp.tile(beta, (1, 2))
    assert out.shape == (B, 8)
    assert jnp.allclose(out, ref, atol=1e-5, rtol=1e-5)

    print("KERNEL_OK")
</pallas_src>

<mosaic_0001>
module attributes {stable_mosaic.version = 11 : i64} {
  func.func @model_kernel(%arg0: memref<2x2xf32, #tpu.memory_space<vmem>>, %arg1: memref<20xf32, #tpu.memory_space<smem>>, %arg2: memref<8x2xf32, #tpu.memory_space<vmem>>) attributes {dimension_semantics = [], scalar_prefetch = 0 : i64, scratch_operands = 0 : i64, tpu.core_type = #tpu.core_type<tc>} {
    %c0 = arith.constant 0 : index
    %c0_0 = arith.constant 0 : index
    %0 = vector.load %arg0[%c0, %c0_0] : memref<2x2xf32, #tpu.memory_space<vmem>>, vector<1x2xf32>
    %c1 = arith.constant 1 : index
    %c0_1 = arith.constant 0 : index
    %1 = vector.load %arg0[%c1, %c0_1] : memref<2x2xf32, #tpu.memory_space<vmem>>, vector<1x2xf32>
    %c0_2 = arith.constant 0 : index
    %2 = memref.load %arg1[%c0_2] : memref<20xf32, #tpu.memory_space<smem>>
    %c4 = arith.constant 4 : index
    %3 = memref.load %arg1[%c4] : memref<20xf32, #tpu.memory_space<smem>>
    %c8 = arith.constant 8 : index
    %4 = memref.load %arg1[%c8] : memref<20xf32, #tpu.memory_space<smem>>
    %c12 = arith.constant 12 : index
    %5 = memref.load %arg1[%c12] : memref<20xf32, #tpu.memory_space<smem>>
    %c16 = arith.constant 16 : index
    %6 = memref.load %arg1[%c16] : memref<20xf32, #tpu.memory_space<smem>>
    %7 = vector.broadcast %2 : f32 to vector<1x2xf32>
    %8 = arith.mulf %0, %7 : vector<1x2xf32>
    %9 = vector.broadcast %3 : f32 to vector<1x2xf32>
    %10 = arith.mulf %1, %9 : vector<1x2xf32>
    %11 = arith.addf %8, %10 : vector<1x2xf32>
    %12 = vector.broadcast %4 : f32 to vector<1x2xf32>
    %13 = arith.addf %11, %12 : vector<1x2xf32>
    %cst = arith.constant dense<0.000000e+00> : vector<1xf32>
    %14 = vector.multi_reduction <add>, %13, %cst [1] : vector<1x2xf32> to vector<1xf32>
    %15 = vector.shape_cast %14 : vector<1xf32> to vector<1x1xf32>
    %16 = arith.mulf %13, %13 : vector<1x2xf32>
    %cst_3 = arith.constant dense<0.000000e+00> : vector<1xf32>
    %17 = vector.multi_reduction <add>, %16, %cst_3 [1] : vector<1x2xf32> to vector<1xf32>
    %18 = vector.shape_cast %17 : vector<1xf32> to vector<1x1xf32>
    %cst_4 = arith.constant 5.000000e-01 : f32
    %19 = vector.broadcast %cst_4 : f32 to vector<1x1xf32>
    %20 = arith.mulf %15, %19 : vector<1x1xf32>
    %cst_5 = arith.constant 5.000000e-01 : f32
    %21 = vector.broadcast %cst_5 : f32 to vector<1x1xf32>
    %22 = arith.mulf %18, %21 : vector<1x1xf32>
    %23 = arith.mulf %20, %20 : vector<1x1xf32>
    %24 = arith.subf %22, %23 : vector<1x1xf32>
    %25 = vector.broadcast %20 : vector<1x1xf32> to vector<1x2xf32>
    %26 = arith.subf %13, %25 : vector<1x2xf32>
    %cst_6 = arith.constant 9.99999974E-6 : f32
    %27 = vector.broadcast %cst_6 : f32 to vector<1x1xf32>
    %28 = arith.addf %24, %27 : vector<1x1xf32>
    %29 = math.rsqrt %28 : vector<1x1xf32>
    %30 = vector.broadcast %29 : vector<1x1xf32> to vector<1x2xf32>
    %31 = arith.mulf %26, %30 : vector<1x2xf32>
    %32 = vector.broadcast %5 : f32 to vector<1x2xf32>
    %33 = arith.mulf %31, %32 : vector<1x2xf32>
    %34 = vector.broadcast %6 : f32 to vector<1x2xf32>
    %35 = arith.addf %33, %34 : vector<1x2xf32>
    %c1_7 = arith.constant 1 : index
    %36 = memref.load %arg1[%c1_7] : memref<20xf32, #tpu.memory_space<smem>>
    %c5 = arith.constant 5 : index
    %37 = memref.load %arg1[%c5] : memref<20xf32, #tpu.memory_space<smem>>
    %c9 = arith.constant 9 : index
    %38 = memref.load %arg1[%c9] : memref<20xf32, #tpu.memory_space<smem>>
    %c13 = arith.constant 13 : index
    %39 = memref.load %arg1[%c13] : memref<20xf32, #tpu.memory_space<smem>>
    %c17 = arith.constant 17 : index
    %40 = memref.load %arg1[%c17] : memref<20xf32, #tpu.memory_space<smem>>
    %41 = vector.broadcast %36 : f32 to vector<1x2xf32>
    %42 = arith.mulf %0, %41 : vector<1x2xf32>
    %43 = vector.broadcast %37 : f32 to vector<1x2xf32>
    %44 = arith.mulf %1, %43 : vector<1x2xf32>
    %45 = arith.addf %42, %44 : vector<1x2xf32>
    %46 = vector.broadcast %38 : f32 to vector<1x2xf32>
    %47 = arith.addf %45, %46 : vector<1x2xf32>
    %cst_8 = arith.constant dense<0.000000e+00> : vector<1xf32>
    %48 = vector.multi_reduction <add>, %47, %cst_8 [1] : vector<1x2xf32> to vector<1xf32>
    %49 = vector.shape_cast %48 : vector<1xf32> to vector<1x1xf32>
    %50 = arith.mulf %47, %47 : vector<1x2xf32>
    %cst_9 = arith.constant dense<0.000000e+00> : vector<1xf32>
    %51 = vector.multi_reduction <add>, %50, %cst_9 [1] : vector<1x2xf32> to vector<1xf32>
    %52 = vector.shape_cast %51 : vector<1xf32> to vector<1x1xf32>
    %cst_10 = arith.constant 5.000000e-01 : f32
    %53 = vector.broadcast %cst_10 : f32 to vector<1x1xf32>
    %54 = arith.mulf %49, %53 : vector<1x1xf32>
    %cst_11 = arith.constant 5.000000e-01 : f32
    %55 = vector.broadcast %cst_11 : f32 to vector<1x1xf32>
    %56 = arith.mulf %52, %55 : vector<1x1xf32>
    %57 = arith.mulf %54, %54 : vector<1x1xf32>
    %58 = arith.subf %56, %57 : vector<1x1xf32>
    %59 = vector.broadcast %54 : vector<1x1xf32> to vector<1x2xf32>
    %60 = arith.subf %47, %59 : vector<1x2xf32>
    %cst_12 = arith.constant 9.99999974E-6 : f32
    %61 = vector.broadcast %cst_12 : f32 to vector<1x1xf32>
    %62 = arith.addf %58, %61 : vector<1x1xf32>
    %63 = math.rsqrt %62 : vector<1x1xf32>
    %64 = vector.broadcast %63 : vector<1x1xf32> to vector<1x2xf32>
    %65 = arith.mulf %60, %64 : vector<1x2xf32>
    %66 = vector.broadcast %39 : f32 to vector<1x2xf32>
    %67 = arith.mulf %65, %66 : vector<1x2xf32>
    %68 = vector.broadcast %40 : f32 to vector<1x2xf32>
    %69 = arith.addf %67, %68 : vector<1x2xf32>
    %c2 = arith.constant 2 : index
    %70 = memref.load %arg1[%c2] : memref<20xf32, #tpu.memory_space<smem>>
    %c6 = arith.constant 6 : index
    %71 = memref.load %arg1[%c6] : memref<20xf32, #tpu.memory_space<smem>>
    %c10 = arith.constant 10 : index
    %72 = memref.load %arg1[%c10] : memref<20xf32, #tpu.memory_space<smem>>
    %c14 = arith.constant 14 : index
    %73 = memref.load %arg1[%c14] : memref<20xf32, #tpu.memory_space<smem>>
    %c18 = arith.constant 18 : index
    %74 = memref.load %arg1[%c18] : memref<20xf32, #tpu.memory_space<smem>>
    %75 = vector.broadcast %70 : f32 to vector<1x2xf32>
    %76 = arith.mulf %0, %75 : vector<1x2xf32>
    %77 = vector.broadcast %71 : f32 to vector<1x2xf32>
    %78 = arith.mulf %1, %77 : vector<1x2xf32>
    %79 = arith.addf %76, %78 : vector<1x2xf32>
    %80 = vector.broadcast %72 : f32 to vector<1x2xf32>
    %81 = arith.addf %79, %80 : vector<1x2xf32>
    %cst_13 = arith.constant dense<0.000000e+00> : vector<1xf32>
    %82 = vector.multi_reduction <add>, %81, %cst_13 [1] : vector<1x2xf32> to vector<1xf32>
    %83 = vector.shape_cast %82 : vector<1xf32> to vector<1x1xf32>
    %84 = arith.mulf %81, %81 : vector<1x2xf32>
    %cst_14 = arith.constant dense<0.000000e+00> : vector<1xf32>
    %85 = vector.multi_reduction <add>, %84, %cst_14 [1] : vector<1x2xf32> to vector<1xf32>
    %86 = vector.shape_cast %85 : vector<1xf32> to vector<1x1xf32>
    %cst_15 = arith.constant 5.000000e-01 : f32
    %87 = vector.broadcast %cst_15 : f32 to vector<1x1xf32>
    %88 = arith.mulf %83, %87 : vector<1x1xf32>
    %cst_16 = arith.constant 5.000000e-01 : f32
    %89 = vector.broadcast %cst_16 : f32 to vector<1x1xf32>
    %90 = arith.mulf %86, %89 : vector<1x1xf32>
    %91 = arith.mulf %88, %88 : vector<1x1xf32>
    %92 = arith.subf %90, %91 : vector<1x1xf32>
    %93 = vector.broadcast %88 : vector<1x1xf32> to vector<1x2xf32>
    %94 = arith.subf %81, %93 : vector<1x2xf32>
    %cst_17 = arith.constant 9.99999974E-6 : f32
    %95 = vector.broadcast %cst_17 : f32 to vector<1x1xf32>
    %96 = arith.addf %92, %95 : vector<1x1xf32>
    %97 = math.rsqrt %96 : vector<1x1xf32>
    %98 = vector.broadcast %97 : vector<1x1xf32> to vector<1x2xf32>
    %99 = arith.mulf %94, %98 : vector<1x2xf32>
    %100 = vector.broadcast %73 : f32 to vector<1x2xf32>
    %101 = arith.mulf %99, %100 : vector<1x2xf32>
    %102 = vector.broadcast %74 : f32 to vector<1x2xf32>
    %103 = arith.addf %101, %102 : vector<1x2xf32>
    %c3 = arith.constant 3 : index
    %104 = memref.load %arg1[%c3] : memref<20xf32, #tpu.memory_space<smem>>
    %c7 = arith.constant 7 : index
    %105 = memref.load %arg1[%c7] : memref<20xf32, #tpu.memory_space<smem>>
    %c11 = arith.constant 11 : index
    %106 = memref.load %arg1[%c11] : memref<20xf32, #tpu.memory_space<smem>>
    %c15 = arith.constant 15 : index
    %107 = memref.load %arg1[%c15] : memref<20xf32, #tpu.memory_space<smem>>
    %c19 = arith.constant 19 : index
    %108 = memref.load %arg1[%c19] : memref<20xf32, #tpu.memory_space<smem>>
    %109 = vector.broadcast %104 : f32 to vector<1x2xf32>
    %110 = arith.mulf %0, %109 : vector<1x2xf32>
    %111 = vector.broadcast %105 : f32 to vector<1x2xf32>
    %112 = arith.mulf %1, %111 : vector<1x2xf32>
    %113 = arith.addf %110, %112 : vector<1x2xf32>
    %114 = vector.broadcast %106 : f32 to vector<1x2xf32>
    %115 = arith.addf %113, %114 : vector<1x2xf32>
    %cst_18 = arith.constant dense<0.000000e+00> : vector<1xf32>
    %116 = vector.multi_reduction <add>, %115, %cst_18 [1] : vector<1x2xf32> to vector<1xf32>
    %117 = vector.shape_cast %116 : vector<1xf32> to vector<1x1xf32>
    %118 = arith.mulf %115, %115 : vector<1x2xf32>
    %cst_19 = arith.constant dense<0.000000e+00> : vector<1xf32>
    %119 = vector.multi_reduction <add>, %118, %cst_19 [1] : vector<1x2xf32> to vector<1xf32>
    %120 = vector.shape_cast %119 : vector<1xf32> to vector<1x1xf32>
    %cst_20 = arith.constant 5.000000e-01 : f32
    %121 = vector.broadcast %cst_20 : f32 to vector<1x1xf32>
    %122 = arith.mulf %117, %121 : vector<1x1xf32>
    %cst_21 = arith.constant 5.000000e-01 : f32
    %123 = vector.broadcast %cst_21 : f32 to vector<1x1xf32>
    %124 = arith.mulf %120, %123 : vector<1x1xf32>
    %125 = arith.mulf %122, %122 : vector<1x1xf32>
    %126 = arith.subf %124, %125 : vector<1x1xf32>
    %127 = vector.broadcast %122 : vector<1x1xf32> to vector<1x2xf32>
    %128 = arith.subf %115, %127 : vector<1x2xf32>
    %cst_22 = arith.constant 9.99999974E-6 : f32
    %129 = vector.broadcast %cst_22 : f32 to vector<1x1xf32>
    %130 = arith.addf %126, %129 : vector<1x1xf32>
    %131 = math.rsqrt %130 : vector<1x1xf32>
    %132 = vector.broadcast %131 : vector<1x1xf32> to vector<1x2xf32>
    %133 = arith.mulf %128, %132 : vector<1x2xf32>
    %134 = vector.broadcast %107 : f32 to vector<1x2xf32>
    %135 = arith.mulf %133, %134 : vector<1x2xf32>
    %136 = vector.broadcast %108 : f32 to vector<1x2xf32>
    %137 = arith.addf %135, %136 : vector<1x2xf32>
    %138 = tpu.concatenate %35, %69, %103, %137, %35, %69, %103, %137 in 0 : vector<1x2xf32>, vector<1x2xf32>, vector<1x2xf32>, vector<1x2xf32>, vector<1x2xf32>, vector<1x2xf32>, vector<1x2xf32>, vector<1x2xf32> -> vector<8x2xf32>
    %c0_23 = arith.constant 0 : index
    %c0_24 = arith.constant 0 : index
    %139 = vector.load %arg2[%c0_23, %c0_24] : memref<8x2xf32, #tpu.memory_space<vmem>>, vector<8x2xf32>
    tpu.vector_store %arg2[%c0_23, %c0_24], %138 {strides = array<i32>} : memref<8x2xf32, #tpu.memory_space<vmem>>, vector<8x2xf32>,
    return
  }
}

</mosaic_0001>

<llo_original>
// kernel: model_forward.1
$region0: #{model_forward.1}
  #allocation0 [shape = 'u32[]', space=smem, size = 0x4, offset = 0x4, fixed_abs, tag = 'smem constant byte address 0x4 - core index']
  #allocation1 [shape = 'u32[144,128]{1,0:T(1,128)}', space=vmem, size = 0x12000, scoped, tag = 'internal scratch']
  %s0 = inlined_call_operand.vmem [shape: f32[2,2], index: 0, kind: input, shape index: {}]
  %s1 = inlined_call_operand.vmem [shape: f32[20], index: 1, kind: input, shape index: {}]
  %s2 = inlined_call_operand.vmem [shape: f32[8,2], index: 2, kind: output, shape index: {}]
  %s3 = sld [smem:[#allocation0]]
  $region22: #{model_forward.1} parent=0
    _
  %s5 = ssub.s32 1, %s3
  %s6 = scalar_select 0, %s5, %s3
  $region1: #{model_forward.1} parent=0
    #allocation2 [shape = 'u8[512]{0}', space=smem, size = 0x200, scoped, tag = 'input window, operand 1, single buffered']
    #allocation3 [shape = 's32[1]{0}', space=sflag, size = 0x4, scoped, tag = 'scoped memory for model_forward.1']
    %7 = vsyncpa [#allocation3], 0
    // Predicated region
    $region2: #{model_forward.1} parent=1 // pred_check
      _
    $region3: #{model_forward.1} parent=1 // pred_check_branch
      %9 = sbr.rel (0) target = $region5
    $region4: #{model_forward.1} parent=1 // pred_region
      _
    $region5: #{model_forward.1} parent=1 // pred_fallthru
      _
    // Predicated region
    $region6: #{model_forward.1} parent=1 // pred_check
      _
    $region7: #{model_forward.1} parent=1 // pred_check_branch
      %11 = sbr.rel (0) target = $region9
    $region8: #{model_forward.1} parent=1 // pred_region
      %s13 = ssub.s32 16, 16
      %14 = vsyncadd [#allocation3], %s13
      %s16 = sshll.u32 %s1, 4
      %s17 = int_to_ptr.vmem [resolvable:$true] %s16
      %19 = dma.vmem_to_smem %s17, 16, [#allocation2], [#allocation3]
    $region9: #{model_forward.1} parent=1 // pred_fallthru
      _
    // Predicated region
    $region10: #{model_forward.1} parent=1 // pred_check
      _
    $region11: #{model_forward.1} parent=1 // pred_check_branch
      %21 = sbr.rel (0) target = $region13
    $region12: #{model_forward.1} parent=1 // pred_region
      %22 = dma.done [#allocation3], 16
    $region13: #{model_forward.1} parent=1 // pred_fallthru
      _
    %23 = sfence
    %v24 = vld [vmem:[%s0] sm:$0x1]
    %v25 = vld [vmem:[%s0 + $0x1] sm:$0x1]
    %s26 = sld [smem:[#allocation2]]
    %s27 = sld [smem:[#allocation2 + $0x4]]
    %s28 = sld [smem:[#allocation2 + $0x8]]
    %s29 = sld [smem:[#allocation2 + $0xc]]
    %s30 = sld [smem:[#allocation2 + $0x10]]
    %v31 = vstv %s26
    %v32 = vmul.f32 %v24, %v31
    %v33 = vstv %s27
    %v34 = vmul.f32 %v25, %v33
    %v35 = vadd.f32 %v32, %v34
    %v36 = vstv %s28
    %v37 = vadd.f32 %v35, %v36
    %vm38 = vcmask 8192
    %v39 = vsel %vm38, %v37, 0.0
    %40 = vadd.xlane.f32.xlu0 %v39
    %v41 = vpop.xlane.xlu0 %40
    %v42 = vmul.f32 %v37, %v37
    %v43 = vsel %vm38, %v42, 0.0
    %44 = vadd.xlane.f32.xlu0 %v43
    %v45 = vpop.xlane.xlu0 %44
    %v46 = vmul.f32 %v41, 0.5
    %v47 = vmul.f32 %v45, 0.5
    %v48 = vmul.f32 %v46, %v46
    %v49 = vsub.f32 %v47, %v48
    %v50 = vsub.f32 %v37, %v46
    %v51 = vadd.f32 %v49, 1e-05
    %v52 = vrsqrt.pop %v51
    %v53 = vmul.f32 %v50, %v52
    %v54 = vstv %s29
    %v55 = vmul.f32 %v53, %v54
    %v56 = vstv %s30
    %v57 = vadd.f32 %v55, %v56
    %s58 = sld [smem:[#allocation2 + $0x1]]
    %s59 = sld [smem:[#allocation2 + $0x5]]
    %s60 = sld [smem:[#allocation2 + $0x9]]
    %s61 = sld [smem:[#allocation2 + $0xd]]
    %s62 = sld [smem:[#allocation2 + $0x11]]
    %v63 = vstv %s58
    %v64 = vmul.f32 %v24, %v63
    %v65 = vstv %s59
    %v66 = vmul.f32 %v25, %v65
    %v67 = vadd.f32 %v64, %v66
    %v68 = vstv %s60
    %v69 = vadd.f32 %v67, %v68
    %v70 = vsel %vm38, %v69, 0.0
    %71 = vadd.xlane.f32.xlu0 %v70
    %v72 = vpop.xlane.xlu0 %71
    %v73 = vmul.f32 %v69, %v69
    %v74 = vsel %vm38, %v73, 0.0
    %75 = vadd.xlane.f32.xlu0 %v74
    %v76 = vpop.xlane.xlu0 %75
    %v77 = vmul.f32 %v72, 0.5
    %v78 = vmul.f32 %v76, 0.5
    %v79 = vmul.f32 %v77, %v77
    %v80 = vsub.f32 %v78, %v79
    %v81 = vsub.f32 %v69, %v77
    %v82 = vadd.f32 %v80, 1e-05
    %v83 = vrsqrt.pop %v82
    %v84 = vmul.f32 %v81, %v83
    %v85 = vstv %s61
    %v86 = vmul.f32 %v84, %v85
    %v87 = vstv %s62
    %v88 = vadd.f32 %v86, %v87
    %s89 = sld [smem:[#allocation2 + $0x2]]
    %s90 = sld [smem:[#allocation2 + $0x6]]
    %s91 = sld [smem:[#allocation2 + $0xa]]
    %s92 = sld [smem:[#allocation2 + $0xe]]
    %s93 = sld [smem:[#allocation2 + $0x12]]
    %v94 = vstv %s89
    %v95 = vmul.f32 %v24, %v94
    %v96 = vstv %s90
    %v97 = vmul.f32 %v25, %v96
    %v98 = vadd.f32 %v95, %v97
    %v99 = vstv %s91
    %v100 = vadd.f32 %v98, %v99
    %v101 = vsel %vm38, %v100, 0.0
    %102 = vadd.xlane.f32.xlu0 %v101
    %v103 = vpop.xlane.xlu0 %102
    %v104 = vmul.f32 %v100, %v100
    %v105 = vsel %vm38, %v104, 0.0
    %106 = vadd.xlane.f32.xlu0 %v105
    %v107 = vpop.xlane.xlu0 %106
    %v108 = vmul.f32 %v103, 0.5
    %v109 = vmul.f32 %v107, 0.5
    %v110 = vmul.f32 %v108, %v108
    %v111 = vsub.f32 %v109, %v110
    %v112 = vsub.f32 %v100, %v108
    %v113 = vadd.f32 %v111, 1e-05
    %v114 = vrsqrt.pop %v113
    %v115 = vmul.f32 %v112, %v114
    %v116 = vstv %s92
    %v117 = vmul.f32 %v115, %v116
    %v118 = vstv %s93
    %v119 = vadd.f32 %v117, %v118
    %s120 = sld [smem:[#allocation2 + $0x3]]
    %s121 = sld [smem:[#allocation2 + $0x7]]
    %s122 = sld [smem:[#allocation2 + $0xb]]
    %s123 = sld [smem:[#allocation2 + $0xf]]
    %s124 = sld [smem:[#allocation2 + $0x13]]
    %v125 = vstv %s120
    %v126 = vmul.f32 %v24, %v125
    %v127 = vstv %s121
    %v128 = vmul.f32 %v25, %v127
    %v129 = vadd.f32 %v126, %v128
    %v130 = vstv %s122
    %v131 = vadd.f32 %v129, %v130
    %v132 = vsel %vm38, %v131, 0.0
    %133 = vadd.xlane.f32.xlu0 %v132
    %v134 = vpop.xlane.xlu0 %133
    %v135 = vmul.f32 %v131, %v131
    %v136 = vsel %vm38, %v135, 0.0
    %137 = vadd.xlane.f32.xlu0 %v136
    %v138 = vpop.xlane.xlu0 %137
    %v139 = vmul.f32 %v134, 0.5
    %v140 = vmul.f32 %v138, 0.5
    %v141 = vmul.f32 %v139, %v139
    %v142 = vsub.f32 %v140, %v141
    %v143 = vsub.f32 %v131, %v139
    %v144 = vadd.f32 %v142, 1e-05
    %v145 = vrsqrt.pop %v144
    %v146 = vmul.f32 %v143, %v145
    %v147 = vstv %s123
    %v148 = vmul.f32 %v146, %v147
    %v149 = vstv %s124
    %v150 = vadd.f32 %v148, %v149
    %v152 = vrot.slane %v88, 7
    %v155 = vrot.slane %v119, 6
    %v158 = vrot.slane %v150, 5
    %v161 = vrot.slane %v57, 4
    %v163 = vrot.slane %v88, 3
    %v165 = vrot.slane %v119, 2
    %v167 = vrot.slane %v150, 1
    %vm169 = vcmask 1040384
    %v170 = vsel %vm169, %v57, %v152
    %vm171 = vcmask 1041408
    %v172 = vsel %vm171, %v170, %v155
    %vm173 = vcmask 1042432
    %v174 = vsel %vm173, %v172, %v158
    %vm175 = vcmask 1043456
    %v176 = vsel %vm175, %v174, %v161
    %vm177 = vcmask 1044480
    %v178 = vsel %vm177, %v176, %v163
    %vm179 = vcmask 1045504
    %v180 = vsel %vm179, %v178, %v165
    %vm181 = vcmask 1046528
    %v182 = vsel %vm181, %v180, %v167
    %vm183 = vcmask 15360
    %184 = vst.msk [vmem:[%s2] sm:$0xff] %vm183, %v182
    // Predicated region
    $region14: #{model_forward.1} parent=1 // pred_check
      _
    $region15: #{model_forward.1} parent=1 // pred_check_branch
      %186 = sbr.rel (0) target = $region17
    $region16: #{model_forward.1} parent=1 // pred_region
      _
    $region17: #{model_forward.1} parent=1 // pred_fallthru
      _
    // Predicated region
    $region18: #{model_forward.1} parent=1 // pred_check
      _
    $region19: #{model_forward.1} parent=1 // pred_check_branch
      %188 = sbr.rel (0) target = $region21
    $region20: #{model_forward.1} parent=1 // pred_region
      _
    $region21: #{model_forward.1} parent=1 // pred_fallthru
      _
    %189 = vsyncpa [#allocation3], 1

</llo_original>
